<compile_context>
chip_gen: v5e
topology: v5e:2x2
jax: 0.10.0
libtpu: 0.0.40
codegen_flags: <defaults>
</compile_context>

<pallas_src>
import functools

import jax
import jax.numpy as jnp
from jax.experimental import pallas as pl
from jax.experimental.pallas import tpu as pltpu


def _mmd_kernel(src_ref, tgt_ref, o_ref, ss_acc, tt_acc, st_acc, *,
                batch, kernel_mul, kernel_num):
    k = pl.program_id(0)

    @pl.when(k == 0)
    def _():
        ss_acc[...] = jnp.zeros_like(ss_acc)
        tt_acc[...] = jnp.zeros_like(tt_acc)
        st_acc[...] = jnp.zeros_like(st_acc)

    # Native-dtype MXU feeds (bf16/f32 pass through; only exotic dtypes upcast).
    s = src_ref[...]
    t = tgt_ref[...]
    if s.dtype not in (jnp.float32, jnp.bfloat16):
        s = s.astype(jnp.float32)
        t = t.astype(jnp.float32)

    dn = (((1,), (1,)), ((), ()))  # contract the feature dim -> (B, B) block Grams
    ss_acc[...] += jax.lax.dot_general(s, s, dn, preferred_element_type=jnp.float32)
    tt_acc[...] += jax.lax.dot_general(t, t, dn, preferred_element_type=jnp.float32)
    st_acc[...] += jax.lax.dot_general(s, t, dn, preferred_element_type=jnp.float32)

    @pl.when(k == pl.num_programs(0) - 1)
    def _():
        b = batch
        n = 2 * b
        gss = ss_acc[...]
        gtt = tt_acc[...]
        gst = st_acc[...]

        # Squared norms sit on the Gram diagonals; extract with one (B,B) mask.
        row = jax.lax.broadcasted_iota(jnp.int32, (b, b), 0)
        col = jax.lax.broadcasted_iota(jnp.int32, (b, b), 1)
        eye = row == col
        diag_s = jnp.where(eye, gss, 0.0)
        diag_t = jnp.where(eye, gtt, 0.0)
        sq_s_col = jnp.sum(diag_s, axis=1, keepdims=True)   # (B, 1): ||s_i||^2
        sq_s_row = jnp.sum(diag_s, axis=0, keepdims=True)   # (1, B)
        sq_t_col = jnp.sum(diag_t, axis=1, keepdims=True)   # (B, 1): ||t_i||^2
        sq_t_row = jnp.sum(diag_t, axis=0, keepdims=True)   # (1, B)

        # Pairwise squared L2 per quadrant (clamped: Gram-form cancellation can
        # go slightly negative). YX is the transpose of XY -> never built.
        l2_xx = jnp.maximum(sq_s_col + sq_s_row - 2.0 * gss, 0.0)
        l2_yy = jnp.maximum(sq_t_col + sq_t_row - 2.0 * gtt, 0.0)
        l2_xy = jnp.maximum(sq_s_col + sq_t_row - 2.0 * gst, 0.0)

        # Data-dependent bandwidth (module always has fix_sigma = None).
        total_l2 = jnp.sum(l2_xx) + jnp.sum(l2_yy) + 2.0 * jnp.sum(l2_xy)
        bandwidth = total_l2 / jnp.float32(n * n - n)
        bandwidth = bandwidth / jnp.float32(kernel_mul ** (kernel_num // 2))

        if kernel_mul == 2.0:
            inv_bw_max = 1.0 / (bandwidth * jnp.float32(2.0 ** (kernel_num - 1)))

            def kernel_sum(l2):
                # One EUP exp at the largest bandwidth, then VPU squarings:
                # exp(-l2/(bw*2^j)) = e^(2^(K-1-j)).
                e = jnp.exp(-l2 * inv_bw_max)
                acc = e
                for _ in range(kernel_num - 1):
                    e = e * e
                    acc = acc + e
                return acc
        else:
            def kernel_sum(l2):
                acc = jnp.zeros_like(l2)
                for i in range(kernel_num):
                    acc = acc + jnp.exp(-l2 / (bandwidth * jnp.float32(kernel_mul ** i)))
                return acc

        # mean(XX + YY - XY - YX) ; sum(YX) == sum(XY) by symmetry.
        loss_sum = (jnp.sum(kernel_sum(l2_xx)) + jnp.sum(kernel_sum(l2_yy))
                    - 2.0 * jnp.sum(kernel_sum(l2_xy)))
        o_ref[...] = (loss_sum / jnp.float32(b * b)).reshape(1, 1)


def _round_up(x, m):
    return ((x + m - 1) // m) * m


def _pick_tile_cap(batch, d_padded, itemsize, budget_bytes=16 << 20):
    """Largest lane-aligned D tile such that the double-buffered input DMA
    footprint (2 inputs x 2 buffers x B x tile_d x itemsize) fits the budget."""
    per_col = 4 * batch * itemsize
    tile = max(128, budget_bytes // per_col)
    if tile >= 512:
        tile = (tile // 512) * 512
    else:
        tile = (tile // 128) * 128
    return int(min(tile, d_padded))


@functools.partial(jax.jit, static_argnames=("kernel_mul", "kernel_num"))
def mmd_loss(source, target, kernel_mul=2.0, kernel_num=5):
    """Equivalent of MMDLoss().forward(source, target).

    source, target: (B, D) arrays of identical shape (any float dtype).
    Returns a scalar f32 loss.
    """
    assert source.shape == target.shape, "MMDLoss requires matching source/target shapes"
    b, d = source.shape
    itemsize = jnp.dtype(source.dtype).itemsize

    # Lane-align D, pick a VMEM-budgeted tile, spread residual padding evenly.
    d_padded = _round_up(d, 128)
    tile_cap = _pick_tile_cap(b, d_padded, itemsize)
    grid_n = -(-d_padded // tile_cap)                     # cdiv
    tile_d = _round_up(-(-d_padded // grid_n), 128)       # <= tile_cap
    d_final = tile_d * grid_n
    if d_final != d:
        pad = ((0, 0), (0, d_final - d))
        source = jnp.pad(source, pad)                     # zero cols: Gram unchanged
        target = jnp.pad(target, pad)

    # Scoped VMEM: double-buffered inputs + 3 (B,B) f32 accumulators + epilogue
    # temporaries + headroom; stays inside v7x's 64 MiB physical VMEM and lifts
    # v5e's 16 MiB default when larger tiles are used.
    vmem_bytes = 4 * b * tile_d * itemsize + 11 * b * b * 4 + (4 << 20)
    vmem_bytes = int(min(max(vmem_bytes, 16 << 20), 60 << 20))

    kernel = functools.partial(
        _mmd_kernel, batch=b, kernel_mul=float(kernel_mul), kernel_num=int(kernel_num))

    out = pl.pallas_call(
        kernel,
        out_shape=jax.ShapeDtypeStruct((1, 1), jnp.float32),
        grid_spec=pltpu.PrefetchScalarGridSpec(
            num_scalar_prefetch=0,
            grid=(grid_n,),
            in_specs=[
                pl.BlockSpec((b, tile_d), lambda k: (0, k)),
                pl.BlockSpec((b, tile_d), lambda k: (0, k)),
            ],
            out_specs=pl.BlockSpec((1, 1), lambda k: (0, 0)),
            scratch_shapes=[
                pltpu.VMEM((b, b), jnp.float32),   # S @ S^T
                pltpu.VMEM((b, b), jnp.float32),   # T @ T^T
                pltpu.VMEM((b, b), jnp.float32),   # S @ T^T
            ],
        ),
        compiler_params=pltpu.CompilerParams(
            dimension_semantics=("arbitrary",),     # D is the reduction axis
            vmem_limit_bytes=vmem_bytes,
        ),
    )(source, target)
    return out[0, 0]


def _mmd_ref(source, target, kernel_mul=2.0, kernel_num=5):
    """Pure-JAX transcription of the PyTorch module (verification only)."""
    source = source.astype(jnp.float32)
    target = target.astype(jnp.float32)
    n_samples = source.shape[0] + target.shape[0]
    total = jnp.concatenate([source, target], axis=0)
    diff = total[None, :, :] - total[:, None, :]
    l2 = jnp.sum(diff ** 2, axis=2)
    bandwidth = jnp.sum(l2) / (n_samples ** 2 - n_samples)
    bandwidth = bandwidth / (kernel_mul ** (kernel_num // 2))
    kernels = sum(jnp.exp(-l2 / (bandwidth * kernel_mul ** i)) for i in range(kernel_num))
    b = source.shape[0]
    xx = kernels[:b, :b]
    yy = kernels[b:, b:]
    xy = kernels[:b, b:]
    yx = kernels[b:, :b]
    return jnp.mean(xx + yy - xy - yx)


if __name__ == "__main__":
    key = jax.random.PRNGKey(0)
    k1, k2 = jax.random.split(key)

    # Shapes implied by the forward: (batch, feature) source/target embeddings.
    B, D = 8, 32
    source = jax.random.normal(k1, (B, D), jnp.float32)
    target = jax.random.normal(k2, (B, D), jnp.float32) + 0.5

    loss = mmd_loss(source, target, kernel_mul=2.0, kernel_num=5)
    loss = jax.block_until_ready(loss)

    ref = _mmd_ref(source, target, kernel_mul=2.0, kernel_num=5)
    assert jnp.allclose(loss, ref, rtol=2e-4, atol=1e-5), (loss, ref)

    print("KERNEL_OK")
</pallas_src>

<mosaic_0001>
module attributes {stable_mosaic.version = 11 : i64} {
  func.func @_mmd_kernel(%arg0: i32, %arg1: memref<8x128xf32, #tpu.memory_space<vmem>>, %arg2: memref<8x128xf32, #tpu.memory_space<vmem>>, %arg3: memref<1x1xf32, #tpu.memory_space<vmem>>, %arg4: memref<8x8xf32, #tpu.memory_space<vmem>>, %arg5: memref<8x8xf32, #tpu.memory_space<vmem>>, %arg6: memref<8x8xf32, #tpu.memory_space<vmem>>) attributes {dimension_semantics = [#tpu.dimension_semantics<arbitrary>], iteration_bounds = array<i64: 1>, scalar_prefetch = 0 : i64, scratch_operands = 3 : i64, tpu.core_type = #tpu.core_type<tc>, window_params = [{transform_indices = @transform_0, window_bounds = array<i64: 8, 128>}, {transform_indices = @transform_1, window_bounds = array<i64: 8, 128>}, {pipeline_mode = #tpu.pipeline_mode<synchronous>, transform_indices = @transform_2, window_bounds = array<i64: 1, 1>}]} {
    %c0_i32 = arith.constant 0 : i32
    %0 = arith.cmpi eq, %arg0, %c0_i32 : i32
    %1 = arith.extui %0 : i1 to i32
    %c0_i32_0 = arith.constant 0 : i32
    %2 = arith.cmpi ne, %1, %c0_i32_0 : i32
    scf.if %2 {
      %cst_20 = arith.constant 0.000000e+00 : f32
      %20 = vector.broadcast %cst_20 : f32 to vector<8x8xf32>
      %c0_21 = arith.constant 0 : index
      %c0_22 = arith.constant 0 : index
      %21 = vector.load %arg4[%c0_21, %c0_22] : memref<8x8xf32, #tpu.memory_space<vmem>>, vector<8x8xf32>
      tpu.vector_store %arg4[%c0_21, %c0_22], %20 {strides = array<i32>} : memref<8x8xf32, #tpu.memory_space<vmem>>, vector<8x8xf32>,
      %cst_23 = arith.constant 0.000000e+00 : f32
      %22 = vector.broadcast %cst_23 : f32 to vector<8x8xf32>
      %c0_24 = arith.constant 0 : index
      %c0_25 = arith.constant 0 : index
      %23 = vector.load %arg5[%c0_24, %c0_25] : memref<8x8xf32, #tpu.memory_space<vmem>>, vector<8x8xf32>
      tpu.vector_store %arg5[%c0_24, %c0_25], %22 {strides = array<i32>} : memref<8x8xf32, #tpu.memory_space<vmem>>, vector<8x8xf32>,
      %cst_26 = arith.constant 0.000000e+00 : f32
      %24 = vector.broadcast %cst_26 : f32 to vector<8x8xf32>
      %c0_27 = arith.constant 0 : index
      %c0_28 = arith.constant 0 : index
      %25 = vector.load %arg6[%c0_27, %c0_28] : memref<8x8xf32, #tpu.memory_space<vmem>>, vector<8x8xf32>
      tpu.vector_store %arg6[%c0_27, %c0_28], %24 {strides = array<i32>} : memref<8x8xf32, #tpu.memory_space<vmem>>, vector<8x8xf32>,
    } else {
    }
    %c0 = arith.constant 0 : index
    %c0_1 = arith.constant 0 : index
    %3 = vector.load %arg1[%c0, %c0_1] : memref<8x128xf32, #tpu.memory_space<vmem>>, vector<8x128xf32>
    %c0_2 = arith.constant 0 : index
    %c0_3 = arith.constant 0 : index
    %4 = vector.load %arg2[%c0_2, %c0_3] : memref<8x128xf32, #tpu.memory_space<vmem>>, vector<8x128xf32>
    %c0_4 = arith.constant 0 : index
    %c0_5 = arith.constant 0 : index
    %5 = vector.load %arg4[%c0_4, %c0_5] : memref<8x8xf32, #tpu.memory_space<vmem>>, vector<8x8xf32>
    %cst = arith.constant dense<0.000000e+00> : vector<8x8xf32>
    %6 = tpu.matmul %3, %3, %cst {dimension_numbers = #tpu.dot_dimension_numbers<[1], [1], [0], [0], [0, 0, 1, 0], [], []>} : vector<8x128xf32>, vector<8x128xf32>, vector<8x8xf32> -> vector<8x8xf32>
    %7 = arith.addf %5, %6 : vector<8x8xf32>
    %c0_6 = arith.constant 0 : index
    %c0_7 = arith.constant 0 : index
    %8 = vector.load %arg4[%c0_6, %c0_7] : memref<8x8xf32, #tpu.memory_space<vmem>>, vector<8x8xf32>
    tpu.vector_store %arg4[%c0_6, %c0_7], %7 {strides = array<i32>} : memref<8x8xf32, #tpu.memory_space<vmem>>, vector<8x8xf32>,
    %c0_8 = arith.constant 0 : index
    %c0_9 = arith.constant 0 : index
    %9 = vector.load %arg5[%c0_8, %c0_9] : memref<8x8xf32, #tpu.memory_space<vmem>>, vector<8x8xf32>
    %cst_10 = arith.constant dense<0.000000e+00> : vector<8x8xf32>
    %10 = tpu.matmul %4, %4, %cst_10 {dimension_numbers = #tpu.dot_dimension_numbers<[1], [1], [0], [0], [0, 0, 1, 0], [], []>} : vector<8x128xf32>, vector<8x128xf32>, vector<8x8xf32> -> vector<8x8xf32>
    %11 = arith.addf %9, %10 : vector<8x8xf32>
    %c0_11 = arith.constant 0 : index
    %c0_12 = arith.constant 0 : index
    %12 = vector.load %arg5[%c0_11, %c0_12] : memref<8x8xf32, #tpu.memory_space<vmem>>, vector<8x8xf32>
    tpu.vector_store %arg5[%c0_11, %c0_12], %11 {strides = array<i32>} : memref<8x8xf32, #tpu.memory_space<vmem>>, vector<8x8xf32>,
    %c0_13 = arith.constant 0 : index
    %c0_14 = arith.constant 0 : index
    %13 = vector.load %arg6[%c0_13, %c0_14] : memref<8x8xf32, #tpu.memory_space<vmem>>, vector<8x8xf32>
    %cst_15 = arith.constant dense<0.000000e+00> : vector<8x8xf32>
    %14 = tpu.matmul %3, %4, %cst_15 {dimension_numbers = #tpu.dot_dimension_numbers<[1], [1], [0], [0], [0, 0, 1, 0], [], []>} : vector<8x128xf32>, vector<8x128xf32>, vector<8x8xf32> -> vector<8x8xf32>
    %15 = arith.addf %13, %14 : vector<8x8xf32>
    %c0_16 = arith.constant 0 : index
    %c0_17 = arith.constant 0 : index
    %16 = vector.load %arg6[%c0_16, %c0_17] : memref<8x8xf32, #tpu.memory_space<vmem>>, vector<8x8xf32>
    tpu.vector_store %arg6[%c0_16, %c0_17], %15 {strides = array<i32>} : memref<8x8xf32, #tpu.memory_space<vmem>>, vector<8x8xf32>,
    %c0_i32_18 = arith.constant 0 : i32
    %17 = arith.cmpi eq, %arg0, %c0_i32_18 : i32
    %18 = arith.extui %17 : i1 to i32
    %c0_i32_19 = arith.constant 0 : i32
    %19 = arith.cmpi ne, %18, %c0_i32_19 : i32
    scf.if %19 {
      %c0_20 = arith.constant 0 : index
      %c0_21 = arith.constant 0 : index
      %20 = vector.load %arg4[%c0_20, %c0_21] : memref<8x8xf32, #tpu.memory_space<vmem>>, vector<8x8xf32>
      %c0_22 = arith.constant 0 : index
      %c0_23 = arith.constant 0 : index
      %21 = vector.load %arg5[%c0_22, %c0_23] : memref<8x8xf32, #tpu.memory_space<vmem>>, vector<8x8xf32>
      %c0_24 = arith.constant 0 : index
      %c0_25 = arith.constant 0 : index
      %22 = vector.load %arg6[%c0_24, %c0_25] : memref<8x8xf32, #tpu.memory_space<vmem>>, vector<8x8xf32>
      %23 = tpu.iota {dimensions = array<i32: 0>} : vector<8x8xi32>
      %24 = tpu.iota {dimensions = array<i32: 1>} : vector<8x8xi32>
      %25 = arith.cmpi eq, %23, %24 : vector<8x8xi32>
      %cst_26 = arith.constant 0.000000e+00 : f32
      %26 = vector.broadcast %cst_26 : f32 to vector<8x8xf32>
      %27 = arith.select %25, %20, %26 : vector<8x8xi1>, vector<8x8xf32>
      %cst_27 = arith.constant 0.000000e+00 : f32
      %28 = vector.broadcast %cst_27 : f32 to vector<8x8xf32>
      %29 = arith.select %25, %21, %28 : vector<8x8xi1>, vector<8x8xf32>
      %cst_28 = arith.constant dense<0.000000e+00> : vector<8xf32>
      %30 = vector.multi_reduction <add>, %27, %cst_28 [1] : vector<8x8xf32> to vector<8xf32>
      %31 = vector.shape_cast %30 : vector<8xf32> to vector<8x1xf32>
      %cst_29 = arith.constant dense<0.000000e+00> : vector<8xf32>
      %32 = vector.multi_reduction <add>, %27, %cst_29 [0] : vector<8x8xf32> to vector<8xf32>
      %33 = vector.shape_cast %32 : vector<8xf32> to vector<1x8xf32>
      %cst_30 = arith.constant dense<0.000000e+00> : vector<8xf32>
      %34 = vector.multi_reduction <add>, %29, %cst_30 [1] : vector<8x8xf32> to vector<8xf32>
      %35 = vector.shape_cast %34 : vector<8xf32> to vector<8x1xf32>
      %cst_31 = arith.constant dense<0.000000e+00> : vector<8xf32>
      %36 = vector.multi_reduction <add>, %29, %cst_31 [0] : vector<8x8xf32> to vector<8xf32>
      %37 = vector.shape_cast %36 : vector<8xf32> to vector<1x8xf32>
      %38 = vector.broadcast %31 : vector<8x1xf32> to vector<8x8xf32>
      %39 = vector.broadcast %33 : vector<1x8xf32> to vector<8x8xf32>
      %40 = arith.addf %38, %39 : vector<8x8xf32>
      %cst_32 = arith.constant 2.000000e+00 : f32
      %41 = vector.broadcast %cst_32 : f32 to vector<8x8xf32>
      %42 = arith.mulf %41, %20 : vector<8x8xf32>
      %43 = arith.subf %40, %42 : vector<8x8xf32>
      %cst_33 = arith.constant 0.000000e+00 : f32
      %44 = vector.broadcast %cst_33 : f32 to vector<8x8xf32>
      %45 = arith.maximumf %43, %44 : vector<8x8xf32>
      %46 = vector.broadcast %35 : vector<8x1xf32> to vector<8x8xf32>
      %47 = vector.broadcast %37 : vector<1x8xf32> to vector<8x8xf32>
      %48 = arith.addf %46, %47 : vector<8x8xf32>
      %cst_34 = arith.constant 2.000000e+00 : f32
      %49 = vector.broadcast %cst_34 : f32 to vector<8x8xf32>
      %50 = arith.mulf %49, %21 : vector<8x8xf32>
      %51 = arith.subf %48, %50 : vector<8x8xf32>
      %cst_35 = arith.constant 0.000000e+00 : f32
      %52 = vector.broadcast %cst_35 : f32 to vector<8x8xf32>
      %53 = arith.maximumf %51, %52 : vector<8x8xf32>
      %54 = vector.broadcast %31 : vector<8x1xf32> to vector<8x8xf32>
      %55 = vector.broadcast %37 : vector<1x8xf32> to vector<8x8xf32>
      %56 = arith.addf %54, %55 : vector<8x8xf32>
      %cst_36 = arith.constant 2.000000e+00 : f32
      %57 = vector.broadcast %cst_36 : f32 to vector<8x8xf32>
      %58 = arith.mulf %57, %22 : vector<8x8xf32>
      %59 = arith.subf %56, %58 : vector<8x8xf32>
      %cst_37 = arith.constant 0.000000e+00 : f32
      %60 = vector.broadcast %cst_37 : f32 to vector<8x8xf32>
      %61 = arith.maximumf %59, %60 : vector<8x8xf32>
      %62 = vector.shape_cast %45 : vector<8x8xf32> to vector<1x8x8xf32>
      %cst_38 = arith.constant dense<0.000000e+00> : vector<1xf32>
      %63 = vector.multi_reduction <add>, %62, %cst_38 [1, 2] : vector<1x8x8xf32> to vector<1xf32>
      %64 = vector.shape_cast %63 : vector<1xf32> to vector<1x1x1xf32>
      %65 = vector.extract %64[0, 0, 0] : f32 from vector<1x1x1xf32>
      %66 = vector.shape_cast %53 : vector<8x8xf32> to vector<1x8x8xf32>
      %cst_39 = arith.constant dense<0.000000e+00> : vector<1xf32>
      %67 = vector.multi_reduction <add>, %66, %cst_39 [1, 2] : vector<1x8x8xf32> to vector<1xf32>
      %68 = vector.shape_cast %67 : vector<1xf32> to vector<1x1x1xf32>
      %69 = vector.extract %68[0, 0, 0] : f32 from vector<1x1x1xf32>
      %70 = arith.addf %65, %69 : f32
      %71 = vector.shape_cast %61 : vector<8x8xf32> to vector<1x8x8xf32>
      %cst_40 = arith.constant dense<0.000000e+00> : vector<1xf32>
      %72 = vector.multi_reduction <add>, %71, %cst_40 [1, 2] : vector<1x8x8xf32> to vector<1xf32>
      %73 = vector.shape_cast %72 : vector<1xf32> to vector<1x1x1xf32>
      %74 = vector.extract %73[0, 0, 0] : f32 from vector<1x1x1xf32>
      %cst_41 = arith.constant 2.000000e+00 : f32
      %75 = arith.mulf %cst_41, %74 : f32
      %76 = arith.addf %70, %75 : f32
      %cst_42 = arith.constant 2.400000e+02 : f32
      %77 = arith.divf %76, %cst_42 : f32
      %cst_43 = arith.constant 4.000000e+00 : f32
      %78 = arith.divf %77, %cst_43 : f32
      %cst_44 = arith.constant 1.600000e+01 : f32
      %79 = arith.mulf %78, %cst_44 : f32
      %cst_45 = arith.constant 1.000000e+00 : f32
      %80 = arith.divf %cst_45, %79 : f32
      %cst_46 = arith.constant 0.000000e+00 : f32
      %81 = vector.broadcast %cst_46 : f32 to vector<8x8xf32>
      %82 = arith.subf %81, %45 : vector<8x8xf32>
      %83 = vector.broadcast %80 : f32 to vector<8x8xf32>
      %84 = arith.mulf %82, %83 : vector<8x8xf32>
      %85 = math.exp %84 : vector<8x8xf32>
      %86 = arith.mulf %85, %85 : vector<8x8xf32>
      %87 = arith.addf %85, %86 : vector<8x8xf32>
      %88 = arith.mulf %86, %86 : vector<8x8xf32>
      %89 = arith.addf %87, %88 : vector<8x8xf32>
      %90 = arith.mulf %88, %88 : vector<8x8xf32>
      %91 = arith.addf %89, %90 : vector<8x8xf32>
      %92 = arith.mulf %90, %90 : vector<8x8xf32>
      %93 = arith.addf %91, %92 : vector<8x8xf32>
      %94 = vector.shape_cast %93 : vector<8x8xf32> to vector<1x8x8xf32>
      %cst_47 = arith.constant dense<0.000000e+00> : vector<1xf32>
      %95 = vector.multi_reduction <add>, %94, %cst_47 [1, 2] : vector<1x8x8xf32> to vector<1xf32>
      %96 = vector.shape_cast %95 : vector<1xf32> to vector<1x1x1xf32>
      %97 = vector.extract %96[0, 0, 0] : f32 from vector<1x1x1xf32>
      %cst_48 = arith.constant 0.000000e+00 : f32
      %98 = vector.broadcast %cst_48 : f32 to vector<8x8xf32>
      %99 = arith.subf %98, %53 : vector<8x8xf32>
      %100 = vector.broadcast %80 : f32 to vector<8x8xf32>
      %101 = arith.mulf %99, %100 : vector<8x8xf32>
      %102 = math.exp %101 : vector<8x8xf32>
      %103 = arith.mulf %102, %102 : vector<8x8xf32>
      %104 = arith.addf %102, %103 : vector<8x8xf32>
      %105 = arith.mulf %103, %103 : vector<8x8xf32>
      %106 = arith.addf %104, %105 : vector<8x8xf32>
      %107 = arith.mulf %105, %105 : vector<8x8xf32>
      %108 = arith.addf %106, %107 : vector<8x8xf32>
      %109 = arith.mulf %107, %107 : vector<8x8xf32>
      %110 = arith.addf %108, %109 : vector<8x8xf32>
      %111 = vector.shape_cast %110 : vector<8x8xf32> to vector<1x8x8xf32>
      %cst_49 = arith.constant dense<0.000000e+00> : vector<1xf32>
      %112 = vector.multi_reduction <add>, %111, %cst_49 [1, 2] : vector<1x8x8xf32> to vector<1xf32>
      %113 = vector.shape_cast %112 : vector<1xf32> to vector<1x1x1xf32>
      %114 = vector.extract %113[0, 0, 0] : f32 from vector<1x1x1xf32>
      %115 = arith.addf %97, %114 : f32
      %cst_50 = arith.constant 0.000000e+00 : f32
      %116 = vector.broadcast %cst_50 : f32 to vector<8x8xf32>
      %117 = arith.subf %116, %61 : vector<8x8xf32>
      %118 = vector.broadcast %80 : f32 to vector<8x8xf32>
      %119 = arith.mulf %117, %118 : vector<8x8xf32>
      %120 = math.exp %119 : vector<8x8xf32>
      %121 = arith.mulf %120, %120 : vector<8x8xf32>
      %122 = arith.addf %120, %121 : vector<8x8xf32>
      %123 = arith.mulf %121, %121 : vector<8x8xf32>
      %124 = arith.addf %122, %123 : vector<8x8xf32>
      %125 = arith.mulf %123, %123 : vector<8x8xf32>
      %126 = arith.addf %124, %125 : vector<8x8xf32>
      %127 = arith.mulf %125, %125 : vector<8x8xf32>
      %128 = arith.addf %126, %127 : vector<8x8xf32>
      %129 = vector.shape_cast %128 : vector<8x8xf32> to vector<1x8x8xf32>
      %cst_51 = arith.constant dense<0.000000e+00> : vector<1xf32>
      %130 = vector.multi_reduction <add>, %129, %cst_51 [1, 2] : vector<1x8x8xf32> to vector<1xf32>
      %131 = vector.shape_cast %130 : vector<1xf32> to vector<1x1x1xf32>
      %132 = vector.extract %131[0, 0, 0] : f32 from vector<1x1x1xf32>
      %cst_52 = arith.constant 2.000000e+00 : f32
      %133 = arith.mulf %cst_52, %132 : f32
      %134 = arith.subf %115, %133 : f32
      %cst_53 = arith.constant 6.400000e+01 : f32
      %135 = arith.divf %134, %cst_53 : f32
      %136 = vector.broadcast %135 : f32 to vector<1x1xf32>
      %c0_54 = arith.constant 0 : index
      %c0_55 = arith.constant 0 : index
      %137 = vector.load %arg3[%c0_54, %c0_55] : memref<1x1xf32, #tpu.memory_space<vmem>>, vector<1x1xf32>
      tpu.vector_store %arg3[%c0_54, %c0_55], %136 {strides = array<i32>} : memref<1x1xf32, #tpu.memory_space<vmem>>, vector<1x1xf32>,
    } else {
    }
    return
  }
  func.func @transform_0(%arg0: i32) -> (i32, i32) {
    %c0_i32 = arith.constant 0 : i32
    %c0_i32_0 = arith.constant 0 : i32
    return %c0_i32, %arg0 : i32, i32
  }
  func.func @transform_1(%arg0: i32) -> (i32, i32) {
    %c0_i32 = arith.constant 0 : i32
    %c0_i32_0 = arith.constant 0 : i32
    return %c0_i32, %arg0 : i32, i32
  }
  func.func @transform_2(%arg0: i32) -> (i32, i32) {
    %c0_i32 = arith.constant 0 : i32
    %c0_i32_0 = arith.constant 0 : i32
    %c0_i32_1 = arith.constant 0 : i32
    return %c0_i32, %c0_i32_0 : i32, i32
  }
}

</mosaic_0001>

<llo_original>
// kernel: mmd_loss.1
$region0: #{mmd_loss.1}
  #allocation0 [shape = 'u32[]', space=smem, size = 0x4, offset = 0x4, fixed_abs, tag = 'smem constant byte address 0x4 - core index']
  #allocation1 [shape = 'u32[72,128]{1,0:T(1,128)}', space=vmem, size = 0x9000, scoped, tag = 'internal scratch']
  #allocation2 [shape = 'f32[8,8]{1,0:T(8,128)}', space=vmem, size = 0x1000, scoped, tag = 'scratch operand']
  #allocation3 [shape = 'f32[8,8]{1,0:T(8,128)}', space=vmem, size = 0x1000, scoped, tag = 'scratch operand']
  #allocation4 [shape = 'f32[8,8]{1,0:T(8,128)}', space=vmem, size = 0x1000, scoped, tag = 'scratch operand']
  %s0 = inlined_call_operand.vmem [shape: f32[8,128], index: 0, kind: input, shape index: {}]
  %s1 = inlined_call_operand.vmem [shape: f32[8,128], index: 1, kind: input, shape index: {}]
  %s2 = inlined_call_operand.hbm [shape: f32[1,1], index: 2, kind: output, shape index: {}]
  %s3 = sld [smem:[#allocation0]]
  $region26: #{mmd_loss.1} parent=0
    _
  %s5 = ssub.s32 1, %s3
  %s6 = scalar_select 0, %s5, %s3
  $region1: #{mmd_loss.1} parent=0
    #allocation5 [shape = 'u8[512]{0}', space=vmem, size = 0x400, scoped, tag = 'output window, operand 0, single buffered']
    #allocation6 [shape = 's32[1]{0}', space=sflag, size = 0x4, scoped, tag = 'scoped memory for mmd_loss.1']
    %7 = vsyncpa [#allocation6], 0
    // Predicated region
    $region2: #{mmd_loss.1} parent=1 // pred_check
      _
    $region3: #{mmd_loss.1} parent=1 // pred_check_branch
      %9 = sbr.rel (0) target = $region5
    $region4: #{mmd_loss.1} parent=1 // pred_region
      _
    $region5: #{mmd_loss.1} parent=1 // pred_fallthru
      _
    // Predicated region
    $region6: #{mmd_loss.1} parent=1 // pred_check
      _
    $region7: #{mmd_loss.1} parent=1 // pred_check_branch
      %11 = sbr.rel (0) target = $region9
    $region8: #{mmd_loss.1} parent=1 // pred_region
      _
    $region9: #{mmd_loss.1} parent=1 // pred_fallthru
      _
    %p12 = scmp.eq.s32.totalorder 0, 0
    // Predicated region
    $region10: #{mmd_loss.1} parent=1 // pred_check
      %p13 = pneg %p12
    $region11: #{mmd_loss.1} parent=1 // pred_check_branch
      %15 = sbr.rel (%p13) target = $region13
    $region12: #{mmd_loss.1} parent=1 // pred_region
      %vm16 = vcmask 64512
      %17 = vst.msk [vmem:[#allocation2] sm:$0xff] %vm16, 0.0
      %18 = vst.msk [vmem:[#allocation3] sm:$0xff] %vm16, 0.0
      %19 = vst.msk [vmem:[#allocation4] sm:$0xff] %vm16, 0.0
    $region13: #{mmd_loss.1} parent=1 // pred_fallthru
      _
    %v20 = vld [vmem:[%s0] sm:$0xff]
    %v21 = vld [vmem:[%s1] sm:$0xff]
    %v22 = vld [vmem:[#allocation2] sm:$0xff]
    %23 = vmatpush.xpose.msra.mxu0 0.0
    %24 = vmatpush.xpose.msra.mxu0 0.0
    %25 = vmatpush.xpose.msra.mxu0 0.0
    %26 = vmatpush.xpose.msra.mxu0 0.0
    %27 = vmatpush.xpose.msra.mxu0 0.0
    %28 = vmatpush.xpose.msra.mxu0 0.0
    %29 = vmatpush.xpose.msra.mxu0 0.0
    %30 = vmatpush.xpose.msra.mxu0 0.0
    %31 = vmatpush.xpose.msra.mxu0 0.0
    %32 = vmatpush.xpose.msra.mxu0 0.0
    %33 = vmatpush.xpose.msra.mxu0 0.0
    %34 = vmatpush.xpose.msra.mxu0 0.0
    %35 = vmatpush.xpose.msra.mxu0 0.0
    %36 = vmatpush.xpose.msra.mxu0 0.0
    %37 = vmatpush.xpose.msra.mxu0 0.0
    %38 = vmatpush.xpose.msra.mxu0 %v20
    %39 = vmatmul.f32.gmra.mxu0 %v20
    %v40 = vpop.f32.mrf.mxu0
    %v41 = vadd.f32 0.0, %v40
    %42 = vdwg.mxu0
    %v43 = vadd.f32 %v22, %v41
    %vm44 = vcmask 64512
    %45 = vst.msk [vmem:[#allocation2] sm:$0xff] %vm44, %v43
    %v46 = vld [vmem:[#allocation3] sm:$0xff]
    %47 = vmatpush.xpose.msra.mxu0 0.0
    %48 = vmatpush.xpose.msra.mxu0 0.0
    %49 = vmatpush.xpose.msra.mxu0 0.0
    %50 = vmatpush.xpose.msra.mxu0 0.0
    %51 = vmatpush.xpose.msra.mxu0 0.0
    %52 = vmatpush.xpose.msra.mxu0 0.0
    %53 = vmatpush.xpose.msra.mxu0 0.0
    %54 = vmatpush.xpose.msra.mxu0 0.0
    %55 = vmatpush.xpose.msra.mxu0 0.0
    %56 = vmatpush.xpose.msra.mxu0 0.0
    %57 = vmatpush.xpose.msra.mxu0 0.0
    %58 = vmatpush.xpose.msra.mxu0 0.0
    %59 = vmatpush.xpose.msra.mxu0 0.0
    %60 = vmatpush.xpose.msra.mxu0 0.0
    %61 = vmatpush.xpose.msra.mxu0 0.0
    %62 = vmatpush.xpose.msra.mxu0 %v21
    %63 = vmatmul.f32.gmra.mxu0 %v21
    %v64 = vpop.f32.mrf.mxu0
    %v65 = vadd.f32 0.0, %v64
    %66 = vdwg.mxu0
    %v67 = vadd.f32 %v46, %v65
    %68 = vst.msk [vmem:[#allocation3] sm:$0xff] %vm44, %v67
    %v69 = vld [vmem:[#allocation4] sm:$0xff]
    %70 = vmatpush.xpose.msra.mxu0 0.0
    %71 = vmatpush.xpose.msra.mxu0 0.0
    %72 = vmatpush.xpose.msra.mxu0 0.0
    %73 = vmatpush.xpose.msra.mxu0 0.0
    %74 = vmatpush.xpose.msra.mxu0 0.0
    %75 = vmatpush.xpose.msra.mxu0 0.0
    %76 = vmatpush.xpose.msra.mxu0 0.0
    %77 = vmatpush.xpose.msra.mxu0 0.0
    %78 = vmatpush.xpose.msra.mxu0 0.0
    %79 = vmatpush.xpose.msra.mxu0 0.0
    %80 = vmatpush.xpose.msra.mxu0 0.0
    %81 = vmatpush.xpose.msra.mxu0 0.0
    %82 = vmatpush.xpose.msra.mxu0 0.0
    %83 = vmatpush.xpose.msra.mxu0 0.0
    %84 = vmatpush.xpose.msra.mxu0 0.0
    %85 = vmatpush.xpose.msra.mxu0 %v21
    %86 = vmatmul.f32.gmra.mxu0 %v20
    %v87 = vpop.f32.mrf.mxu0
    %v88 = vadd.f32 0.0, %v87
    %89 = vdwg.mxu0
    %v90 = vadd.f32 %v69, %v88
    %91 = vst.msk [vmem:[#allocation4] sm:$0xff] %vm44, %v90
    // Predicated region
    $region14: #{mmd_loss.1} parent=1 // pred_check
      %p92 = pneg %p12
    $region15: #{mmd_loss.1} parent=1 // pred_check_branch
      %94 = sbr.rel (%p92) target = $region17
    $region16: #{mmd_loss.1} parent=1 // pred_region
      %v95 = vld [vmem:[#allocation2] sm:$0xff]
      %v96 = vld [vmem:[#allocation3] sm:$0xff]
      %v97 = vld [vmem:[#allocation4] sm:$0xff]
      %v98 = vlaneseq
      %v99 = vshrl.u32 %v98, 7
      %v100 = vlaneseq
      %v101 = vand.u32 %v100, 127
      %vm102 = vcmp.eq.s32.totalorder %v99, %v101
      %v103 = vsel %vm102, %v95, 0.0
      %v104 = vsel %vm102, %v96, 0.0
      %v105 = vsel %vm44, %v103, 0.0
      %106 = vadd.xlane.f32.xlu0 %v105
      %v107 = vpop.xlane.xlu0 %106
      %v108 = vrot.slane %v105, 4
      %v109 = vadd.f32 %v105, %v108
      %v110 = vrot.slane %v109, 2
      %v111 = vadd.f32 %v109, %v110
      %v112 = vrot.slane %v111, 1
      %v113 = vadd.f32 %v111, %v112
      %v114 = vsel %vm44, %v104, 0.0
      %115 = vadd.xlane.f32.xlu0 %v114
      %v116 = vpop.xlane.xlu0 %115
      %v117 = vrot.slane %v114, 4
      %v118 = vadd.f32 %v114, %v117
      %v119 = vrot.slane %v118, 2
      %v120 = vadd.f32 %v118, %v119
      %v121 = vrot.slane %v120, 1
      %v122 = vadd.f32 %v120, %v121
      %v123 = vadd.f32 %v107, %v113
      %v124 = vmul.f32 %v95, 2.0
      %v125 = vsub.f32 %v123, %v124
      %v126 = vmax.f32 %v125, 0.0
      %v127 = vadd.f32 %v116, %v122
      %v128 = vmul.f32 %v96, 2.0
      %v129 = vsub.f32 %v127, %v128
      %v130 = vmax.f32 %v129, 0.0
      %v131 = vadd.f32 %v107, %v122
      %v132 = vmul.f32 %v97, 2.0
      %v133 = vsub.f32 %v131, %v132
      %v134 = vmax.f32 %v133, 0.0
      %v135 = vsel %vm44, %v126, 0.0
      %136 = vadd.xlane.f32.xlu0 %v135
      %v137 = vpop.xlane.xlu0 %136
      %v138 = vrot.slane %v137, 4
      %v139 = vadd.f32 %v137, %v138
      %v140 = vrot.slane %v139, 2
      %v141 = vadd.f32 %v139, %v140
      %v142 = vrot.slane %v141, 1
      %v143 = vadd.f32 %v141, %v142
      %s144 = vtos %v143
      %v145 = vsel %vm44, %v130, 0.0
      %146 = vadd.xlane.f32.xlu0 %v145
      %v147 = vpop.xlane.xlu0 %146
      %v148 = vrot.slane %v147, 4
      %v149 = vadd.f32 %v147, %v148
      %v150 = vrot.slane %v149, 2
      %v151 = vadd.f32 %v149, %v150
      %v152 = vrot.slane %v151, 1
      %v153 = vadd.f32 %v151, %v152
      %s154 = vtos %v153
      %s155 = sadd.f32 %s144, %s154
      %v156 = vsel %vm44, %v134, 0.0
      %157 = vadd.xlane.f32.xlu0 %v156
      %v158 = vpop.xlane.xlu0 %157
      %v159 = vrot.slane %v158, 4
      %v160 = vadd.f32 %v158, %v159
      %v161 = vrot.slane %v160, 2
      %v162 = vadd.f32 %v160, %v161
      %v163 = vrot.slane %v162, 1
      %v164 = vadd.f32 %v162, %v163
      %s165 = vtos %v164
      %s166 = smul.f32 %s165, 2.0
      %s167 = sadd.f32 %s155, %s166
      %v168 = vrcp.pop 240.0
      %v169 = vmul.f32 240.0, %v168
      %v170 = vsub.f32 1.0, %v169
      %v171 = vmul.f32 %v168, %v170
      %v172 = vadd.f32 %v168, %v171
      %vm173 = vweird.f32 %v168
      %v174 = vsel %vm173, %v168, %v172
      %s175 = vtos %v174
      %s176 = smul.f32 %s167, %s175
      %v177 = vrcp.pop 4.0
      %v178 = vmul.f32 4.0, %v177
      %v179 = vsub.f32 1.0, %v178
      %v180 = vmul.f32 %v177, %v179
      %v181 = vadd.f32 %v177, %v180
      %vm182 = vweird.f32 %v177
      %v183 = vsel %vm182, %v177, %v181
      %s184 = vtos %v183
      %s185 = smul.f32 %s176, %s184
      %s186 = smul.f32 %s185, 16.0
      %v187 = vstv %s186
      %v188 = vrcp.pop %v187
      %v189 = vmul.f32 %v187, %v188
      %v190 = vsub.f32 1.0, %v189
      %v191 = vmul.f32 %v188, %v190
      %v192 = vadd.f32 %v188, %v191
      %vm193 = vweird.f32 %v187
      %vm194 = vweird.f32 %v188
      %vm195 = vmor %vm193, %vm194
      %v196 = vsel %vm195, %v188, %v192
      %v197 = vand.u32 2147483647, %v187
      %vm198 = vcmp.eq.f32.partialorder %v197, 8.507059e+37
      %v199 = vand.u32 %v187, 2147483648
      %v200 = vor.u32 1.1754944e-38, %v199
      %v201 = vsel %vm198, %v200, %v196
      %s202 = vtos %v201
      %v203 = vsub.f32 0.0, %v126
      %v204 = vstv %s202
      %v205 = vmul.f32 %v203, %v204
      %v206 = vmul.f32 %v205, 1.442695
      %v207 = vpow.pop %v206
      %v208 = vmul.f32 %v207, %v207
      %v209 = vadd.f32 %v207, %v208
      %v210 = vmul.f32 %v208, %v208
      %v211 = vadd.f32 %v209, %v210
      %v212 = vmul.f32 %v210, %v210
      %v213 = vadd.f32 %v211, %v212
      %v214 = vmul.f32 %v212, %v212
      %v215 = vadd.f32 %v213, %v214
      %v216 = vsel %vm44, %v215, 0.0
      %217 = vadd.xlane.f32.xlu0 %v216
      %v218 = vpop.xlane.xlu0 %217
      %v219 = vrot.slane %v218, 4
      %v220 = vadd.f32 %v218, %v219
      %v221 = vrot.slane %v220, 2
      %v222 = vadd.f32 %v220, %v221
      %v223 = vrot.slane %v222, 1
      %v224 = vadd.f32 %v222, %v223
      %s225 = vtos %v224
      %v226 = vsub.f32 0.0, %v130
      %v227 = vmul.f32 %v226, %v204
      %v228 = vmul.f32 %v227, 1.442695
      %v229 = vpow.pop %v228
      %v230 = vmul.f32 %v229, %v229
      %v231 = vadd.f32 %v229, %v230
      %v232 = vmul.f32 %v230, %v230
      %v233 = vadd.f32 %v231, %v232
      %v234 = vmul.f32 %v232, %v232
      %v235 = vadd.f32 %v233, %v234
      %v236 = vmul.f32 %v234, %v234
      %v237 = vadd.f32 %v235, %v236
      %v238 = vsel %vm44, %v237, 0.0
      %239 = vadd.xlane.f32.xlu0 %v238
      %v240 = vpop.xlane.xlu0 %239
      %v241 = vrot.slane %v240, 4
      %v242 = vadd.f32 %v240, %v241
      %v243 = vrot.slane %v242, 2
      %v244 = vadd.f32 %v242, %v243
      %v245 = vrot.slane %v244, 1
      %v246 = vadd.f32 %v244, %v245
      %s247 = vtos %v246
      %s248 = sadd.f32 %s225, %s247
      %v249 = vsub.f32 0.0, %v134
      %v250 = vmul.f32 %v249, %v204
      %v251 = vmul.f32 %v250, 1.442695
      %v252 = vpow.pop %v251
      %v253 = vmul.f32 %v252, %v252
      %v254 = vadd.f32 %v252, %v253
      %v255 = vmul.f32 %v253, %v253
      %v256 = vadd.f32 %v254, %v255
      %v257 = vmul.f32 %v255, %v255
      %v258 = vadd.f32 %v256, %v257
      %v259 = vmul.f32 %v257, %v257
      %v260 = vadd.f32 %v258, %v259
      %v261 = vsel %vm44, %v260, 0.0
      %262 = vadd.xlane.f32.xlu0 %v261
      %v263 = vpop.xlane.xlu0 %262
      %v264 = vrot.slane %v263, 4
      %v265 = vadd.f32 %v263, %v264
      %v266 = vrot.slane %v265, 2
      %v267 = vadd.f32 %v265, %v266
      %v268 = vrot.slane %v267, 1
      %v269 = vadd.f32 %v267, %v268
      %s270 = vtos %v269
      %s271 = smul.f32 %s270, 2.0
      %s272 = ssub.f32 %s248, %s271
      %v273 = vrcp.pop 64.0
      %v274 = vmul.f32 64.0, %v273
      %v275 = vsub.f32 1.0, %v274
      %v276 = vmul.f32 %v273, %v275
      %v277 = vadd.f32 %v273, %v276
      %vm278 = vweird.f32 %v273
      %v279 = vsel %vm278, %v273, %v277
      %s280 = vtos %v279
      %s281 = smul.f32 %s272, %s280
      %v282 = vstv %s281
      %vm283 = vcmask 0
      %284 = vst.msk [vmem:[#allocation5] sm:$0x1] %vm283, %v282
    $region17: #{mmd_loss.1} parent=1 // pred_fallthru
      _
    // Predicated region
    $region18: #{mmd_loss.1} parent=1 // pred_check
      _
    $region19: #{mmd_loss.1} parent=1 // pred_check_branch
      %286 = sbr.rel (0) target = $region21
    $region20: #{mmd_loss.1} parent=1 // pred_region
      %288 = vsyncadd [#allocation6], 0
      %s290 = sshll.u32 [#allocation5], 4
      %s291 = int_to_ptr.vmem [resolvable:$true] %s290
      %s292 = sshll.u32 %s2, 4
      %s293 = int_to_ptr.hbm [resolvable:$true] %s292
      %295 = dma.vmem_to_hbm [thread:$0]  %s291, 16, %s293, [#allocation6]
    $region21: #{mmd_loss.1} parent=1 // pred_fallthru
      _
    // Predicated region
    $region22: #{mmd_loss.1} parent=1 // pred_check
      _
    $region23: #{mmd_loss.1} parent=1 // pred_check_branch
      %297 = sbr.rel (0) target = $region25
    $region24: #{mmd_loss.1} parent=1 // pred_region
      %299 = dma.done [#allocation6], 16
    $region25: #{mmd_loss.1} parent=1 // pred_fallthru
      _
    %300 = vsyncpa [#allocation6], 1

</llo_original>
